<compile_context>
chip_gen: v5e
topology: v5e:2x2
jax: 0.10.0
libtpu: 0.0.40
codegen_flags: <defaults>
</compile_context>

<pallas_src>
import jax
import jax.numpy as jnp
from jax.experimental import pallas as pl
from jax.experimental.pallas import tpu as pltpu


def dnn_kernel(x_ref, w1_ref, b1_ref, w2_ref, b2_ref, w3_ref, b3_ref, o_ref):
    # Cast the batch tile to bf16 in-kernel (VPU, hidden under the pipeline).
    x = x_ref[...].astype(jnp.bfloat16)

    # fc1 + ReLU  (bf16 operands, f32 accumulation on the MXU)
    h = jnp.dot(x, w1_ref[...], preferred_element_type=jnp.float32)
    h = jnp.maximum(h + b1_ref[...], 0.0)
    # dropout (p=0.5): identity at inference time
    h = h.astype(jnp.bfloat16)          # keep inter-layer data / MXU feed in bf16

    # fc2 + ReLU
    h = jnp.dot(h, w2_ref[...], preferred_element_type=jnp.float32)
    h = jnp.maximum(h + b2_ref[...], 0.0)
    # dropout (p=0.5): identity at inference time
    h = h.astype(jnp.bfloat16)

    # fc3 (no activation); output columns are zero-padded to 128 lanes so the
    # store is an unmasked, lane-dense vst.
    out = jnp.dot(h, w3_ref[...], preferred_element_type=jnp.float32) + b3_ref[...]
    o_ref[...] = out.astype(o_ref.dtype)


def _round_up(x, m):
    return ((x + m - 1) // m) * m


def _choose_tb(B, max_tb=512):
    """MXU-filling batch tile; >=2 grid steps for large B (v7x megacore)."""
    if B <= 128:
        return _round_up(B, 16)                     # single small tile
    return min(max_tb, _round_up((B + 1) // 2, 128))


def dnn_forward(x, w1, b1, w2, b2, w3, b3, *, max_tb=512):
    """Fused DNN forward. Tiles over the batch dimension; weights stay fully
    resident in VMEM across batch tiles."""
    B, d_in = x.shape
    d_out = w3.shape[1]

    # ---- pad output features to a lane-dense multiple of 128 columns ----
    d_out_p = _round_up(d_out, 128)
    w3_p = jnp.zeros((w3.shape[0], d_out_p), w3.dtype).at[:, :d_out].set(w3)
    b3_p = jnp.zeros((1, d_out_p), jnp.float32).at[:, :d_out].set(
        b3.reshape(1, -1).astype(jnp.float32))

    # ---- choose batch tile and pad the batch to a multiple of it ----
    tb = _choose_tb(B, max_tb)
    B_p = _round_up(B, tb)
    x_p = x if B_p == B else jnp.pad(x, ((0, B_p - B), (0, 0)))

    # ---- bf16 MXU weights (one-time cast, tiny), f32 biases ----
    w1_bf = w1.astype(jnp.bfloat16)
    w2_bf = w2.astype(jnp.bfloat16)
    w3_bf = w3_p.astype(jnp.bfloat16)
    b1_f = b1.reshape(1, -1).astype(jnp.float32)
    b2_f = b2.reshape(1, -1).astype(jnp.float32)
    b3_f = b3_p

    grid = (B_p // tb,)

    d_h1, d_h2 = w1.shape[1], w2.shape[1]
    flops = 2 * B_p * (d_in * d_h1 + d_h1 * d_h2 + d_h2 * d_out_p)
    bytes_accessed = (
        x_p.size * x_p.dtype.itemsize
        + w1_bf.size * 2 + w2_bf.size * 2 + w3_bf.size * 2
        + b1_f.size * 4 + b2_f.size * 4 + b3_f.size * 4
        + B_p * d_out_p * 4)

    # NOTE: resident weights use constant index_maps, so Pallas re-DMAs them
    # only once; their extra double-buffer is a few hundred KB and is left as
    # is at these sizes.
    out_p = pl.pallas_call(
        dnn_kernel,
        out_shape=jax.ShapeDtypeStruct((B_p, d_out_p), jnp.float32),
        grid_spec=pltpu.PrefetchScalarGridSpec(
            num_scalar_prefetch=0,
            grid=grid,
            in_specs=[
                pl.BlockSpec((tb, d_in), lambda i: (i, 0)),     # x tile (f32)
                pl.BlockSpec(w1_bf.shape, lambda i: (0, 0)),    # W1 (resident)
                pl.BlockSpec(b1_f.shape, lambda i: (0, 0)),     # b1
                pl.BlockSpec(w2_bf.shape, lambda i: (0, 0)),    # W2 (resident)
                pl.BlockSpec(b2_f.shape, lambda i: (0, 0)),     # b2
                pl.BlockSpec(w3_bf.shape, lambda i: (0, 0)),    # W3 (resident, padded)
                pl.BlockSpec(b3_f.shape, lambda i: (0, 0)),     # b3 (padded)
            ],
            out_specs=pl.BlockSpec((tb, d_out_p), lambda i: (i, 0)),
        ),
        compiler_params=pltpu.CompilerParams(
            dimension_semantics=("parallel",),
            vmem_limit_bytes=32 * 1024 * 1024),
        cost_estimate=pl.CostEstimate(
            flops=flops, transcendentals=0, bytes_accessed=bytes_accessed),
    )(x_p, w1_bf, b1_f, w2_bf, b2_f, w3_bf, b3_f)

    # strip batch + output-column padding
    return out_p[:B, :d_out].astype(x.dtype)


def init_params(key, input_dim, output_dim=2):
    """Deterministic synthetic parameters matching DNN(input_dim, output_dim)."""
    k1, k2, k3, k4, k5, k6 = jax.random.split(key, 6)
    w1 = jax.random.normal(k1, (input_dim, 512), jnp.float32) * 0.05
    b1 = jax.random.normal(k2, (1, 512), jnp.float32) * 0.01
    w2 = jax.random.normal(k3, (512, 128), jnp.float32) * 0.05
    b2 = jax.random.normal(k4, (1, 128), jnp.float32) * 0.01
    w3 = jax.random.normal(k5, (128, output_dim), jnp.float32) * 0.05
    b3 = jax.random.normal(k6, (1, output_dim), jnp.float32) * 0.01
    return w1, b1, w2, b2, w3, b3


def dnn_reference(x, w1, b1, w2, b2, w3, b3):
    h = jnp.maximum(x @ w1 + b1, 0.0)
    h = jnp.maximum(h @ w2 + b2, 0.0)
    return h @ w3 + b3


if __name__ == "__main__":
    key = jax.random.PRNGKey(0)
    kx, kp, kx2 = jax.random.split(key, 3)

    INPUT_DIM, OUTPUT_DIM = 32, 2
    params = init_params(kp, INPUT_DIM, OUTPUT_DIM)

    # small-batch path (single tile, batch padded 8 -> 16)
    B = 8
    x = jax.random.normal(kx, (B, INPUT_DIM), jnp.float32)
    out = jax.block_until_ready(dnn_forward(x, *params))
    ref = dnn_reference(x, *params)
    assert out.shape == (B, OUTPUT_DIM)
    # bf16 operands / f32 accumulation -> relaxed tolerance vs f32 reference
    assert jnp.allclose(out, ref, atol=2e-2, rtol=2e-2)

    # multi-tile path (grid of 2 parallel batch tiles)
    B2 = 256
    x2 = jax.random.normal(kx2, (B2, INPUT_DIM), jnp.float32)
    out2 = jax.block_until_ready(dnn_forward(x2, *params))
    ref2 = dnn_reference(x2, *params)
    assert out2.shape == (B2, OUTPUT_DIM)
    assert jnp.allclose(out2, ref2, atol=2e-2, rtol=2e-2)

    print("KERNEL_OK")
</pallas_src>

<mosaic_0001>
module attributes {stable_mosaic.version = 11 : i64} {
  func.func @dnn_kernel(%arg0: i32, %arg1: memref<16x32xf32, #tpu.memory_space<vmem>>, %arg2: memref<32x512xbf16, #tpu.memory_space<vmem>>, %arg3: memref<1x512xf32, #tpu.memory_space<vmem>>, %arg4: memref<512x128xbf16, #tpu.memory_space<vmem>>, %arg5: memref<1x128xf32, #tpu.memory_space<vmem>>, %arg6: memref<128x128xbf16, #tpu.memory_space<vmem>>, %arg7: memref<1x128xf32, #tpu.memory_space<vmem>>, %arg8: memref<16x128xf32, #tpu.memory_space<vmem>>) attributes {dimension_semantics = [#tpu.dimension_semantics<parallel>], iteration_bounds = array<i64: 1>, scalar_prefetch = 0 : i64, scratch_operands = 0 : i64, tpu.core_type = #tpu.core_type<tc>, window_params = [{transform_indices = @transform_0, window_bounds = array<i64: 16, 32>}, {pipeline_mode = #tpu.pipeline_mode<synchronous>, transform_indices = @transform_1, window_bounds = array<i64: 32, 512>}, {pipeline_mode = #tpu.pipeline_mode<synchronous>, transform_indices = @transform_2, window_bounds = array<i64: 1, 512>}, {pipeline_mode = #tpu.pipeline_mode<synchronous>, transform_indices = @transform_3, window_bounds = array<i64: 512, 128>}, {pipeline_mode = #tpu.pipeline_mode<synchronous>, transform_indices = @transform_4, window_bounds = array<i64: 1, 128>}, {pipeline_mode = #tpu.pipeline_mode<synchronous>, transform_indices = @transform_5, window_bounds = array<i64: 128, 128>}, {pipeline_mode = #tpu.pipeline_mode<synchronous>, transform_indices = @transform_6, window_bounds = array<i64: 1, 128>}, {transform_indices = @transform_7, window_bounds = array<i64: 16, 128>}]} {
    %c0 = arith.constant 0 : index
    %c0_0 = arith.constant 0 : index
    %0 = vector.load %arg1[%c0, %c0_0] : memref<16x32xf32, #tpu.memory_space<vmem>>, vector<16x32xf32>
    %1 = arith.truncf %0 : vector<16x32xf32> to vector<16x32xbf16>
    %c0_1 = arith.constant 0 : index
    %c0_2 = arith.constant 0 : index
    %2 = vector.load %arg2[%c0_1, %c0_2] : memref<32x512xbf16, #tpu.memory_space<vmem>>, vector<32x512xbf16>
    %cst = arith.constant dense<0.000000e+00> : vector<16x512xf32>
    %3 = tpu.matmul %1, %2, %cst {dimension_numbers = #tpu.dot_dimension_numbers<[1], [0], [0], [1], [0, 0, 1, 1], [], []>} : vector<16x32xbf16>, vector<32x512xbf16>, vector<16x512xf32> -> vector<16x512xf32>
    %c0_3 = arith.constant 0 : index
    %c0_4 = arith.constant 0 : index
    %4 = vector.load %arg3[%c0_3, %c0_4] : memref<1x512xf32, #tpu.memory_space<vmem>>, vector<1x512xf32>
    %5 = vector.broadcast %4 : vector<1x512xf32> to vector<16x512xf32>
    %6 = arith.addf %3, %5 : vector<16x512xf32>
    %cst_5 = arith.constant 0.000000e+00 : f32
    %7 = vector.broadcast %cst_5 : f32 to vector<16x512xf32>
    %8 = arith.maximumf %6, %7 : vector<16x512xf32>
    %9 = arith.truncf %8 : vector<16x512xf32> to vector<16x512xbf16>
    %c0_6 = arith.constant 0 : index
    %c0_7 = arith.constant 0 : index
    %10 = vector.load %arg4[%c0_6, %c0_7] : memref<512x128xbf16, #tpu.memory_space<vmem>>, vector<512x128xbf16>
    %cst_8 = arith.constant dense<0.000000e+00> : vector<16x128xf32>
    %11 = tpu.matmul %9, %10, %cst_8 {dimension_numbers = #tpu.dot_dimension_numbers<[1], [0], [0], [1], [0, 0, 1, 1], [], []>} : vector<16x512xbf16>, vector<512x128xbf16>, vector<16x128xf32> -> vector<16x128xf32>
    %c0_9 = arith.constant 0 : index
    %c0_10 = arith.constant 0 : index
    %12 = vector.load %arg5[%c0_9, %c0_10] : memref<1x128xf32, #tpu.memory_space<vmem>>, vector<1x128xf32>
    %13 = vector.broadcast %12 : vector<1x128xf32> to vector<16x128xf32>
    %14 = arith.addf %11, %13 : vector<16x128xf32>
    %cst_11 = arith.constant 0.000000e+00 : f32
    %15 = vector.broadcast %cst_11 : f32 to vector<16x128xf32>
    %16 = arith.maximumf %14, %15 : vector<16x128xf32>
    %17 = arith.truncf %16 : vector<16x128xf32> to vector<16x128xbf16>
    %c0_12 = arith.constant 0 : index
    %c0_13 = arith.constant 0 : index
    %18 = vector.load %arg6[%c0_12, %c0_13] : memref<128x128xbf16, #tpu.memory_space<vmem>>, vector<128x128xbf16>
    %cst_14 = arith.constant dense<0.000000e+00> : vector<16x128xf32>
    %19 = tpu.matmul %17, %18, %cst_14 {dimension_numbers = #tpu.dot_dimension_numbers<[1], [0], [0], [1], [0, 0, 1, 1], [], []>} : vector<16x128xbf16>, vector<128x128xbf16>, vector<16x128xf32> -> vector<16x128xf32>
    %c0_15 = arith.constant 0 : index
    %c0_16 = arith.constant 0 : index
    %20 = vector.load %arg7[%c0_15, %c0_16] : memref<1x128xf32, #tpu.memory_space<vmem>>, vector<1x128xf32>
    %21 = vector.broadcast %20 : vector<1x128xf32> to vector<16x128xf32>
    %22 = arith.addf %19, %21 : vector<16x128xf32>
    %c0_17 = arith.constant 0 : index
    %c0_18 = arith.constant 0 : index
    %23 = vector.load %arg8[%c0_17, %c0_18] : memref<16x128xf32, #tpu.memory_space<vmem>>, vector<16x128xf32>
    tpu.vector_store %arg8[%c0_17, %c0_18], %22 {strides = array<i32>} : memref<16x128xf32, #tpu.memory_space<vmem>>, vector<16x128xf32>,
    return
  }
  func.func @transform_0(%arg0: i32) -> (i32, i32) {
    %c0_i32 = arith.constant 0 : i32
    %c0_i32_0 = arith.constant 0 : i32
    return %arg0, %c0_i32 : i32, i32
  }
  func.func @transform_1(%arg0: i32) -> (i32, i32) {
    %c0_i32 = arith.constant 0 : i32
    %c0_i32_0 = arith.constant 0 : i32
    %c0_i32_1 = arith.constant 0 : i32
    return %c0_i32, %c0_i32_0 : i32, i32
  }
  func.func @transform_2(%arg0: i32) -> (i32, i32) {
    %c0_i32 = arith.constant 0 : i32
    %c0_i32_0 = arith.constant 0 : i32
    %c0_i32_1 = arith.constant 0 : i32
    return %c0_i32, %c0_i32_0 : i32, i32
  }
  func.func @transform_3(%arg0: i32) -> (i32, i32) {
    %c0_i32 = arith.constant 0 : i32
    %c0_i32_0 = arith.constant 0 : i32
    %c0_i32_1 = arith.constant 0 : i32
    return %c0_i32, %c0_i32_0 : i32, i32
  }
  func.func @transform_4(%arg0: i32) -> (i32, i32) {
    %c0_i32 = arith.constant 0 : i32
    %c0_i32_0 = arith.constant 0 : i32
    %c0_i32_1 = arith.constant 0 : i32
    return %c0_i32, %c0_i32_0 : i32, i32
  }
  func.func @transform_5(%arg0: i32) -> (i32, i32) {
    %c0_i32 = arith.constant 0 : i32
    %c0_i32_0 = arith.constant 0 : i32
    %c0_i32_1 = arith.constant 0 : i32
    return %c0_i32, %c0_i32_0 : i32, i32
  }
  func.func @transform_6(%arg0: i32) -> (i32, i32) {
    %c0_i32 = arith.constant 0 : i32
    %c0_i32_0 = arith.constant 0 : i32
    %c0_i32_1 = arith.constant 0 : i32
    return %c0_i32, %c0_i32_0 : i32, i32
  }
  func.func @transform_7(%arg0: i32) -> (i32, i32) {
    %c0_i32 = arith.constant 0 : i32
    %c0_i32_0 = arith.constant 0 : i32
    return %arg0, %c0_i32 : i32, i32
  }
}

</mosaic_0001>

<llo_original>
// kernel: tpu_custom_call.1
$region0: #{tpu_custom_call.1}
  #allocation0 [shape = 'u32[]', space=smem, size = 0x4, offset = 0x4, fixed_abs, tag = 'smem constant byte address 0x4 - core index']
  #allocation1 [shape = 'u32[72,128]{1,0:T(1,128)}', space=vmem, size = 0x9000, scoped, tag = 'internal scratch']
  %s0 = inlined_call_operand.hbm [shape: f32[16,32], index: 0, kind: input, shape index: {}]
  %s1 = inlined_call_operand.hbm [shape: bf16[32,512], index: 1, kind: input, shape index: {}]
  %s2 = inlined_call_operand.hbm [shape: f32[1,512], index: 2, kind: input, shape index: {}]
  %s3 = inlined_call_operand.hbm [shape: bf16[512,128], index: 3, kind: input, shape index: {}]
  %s4 = inlined_call_operand.vmem [shape: f32[1,128], index: 4, kind: input, shape index: {}]
  %s5 = inlined_call_operand.hbm [shape: bf16[128,128], index: 5, kind: input, shape index: {}]
  %s6 = inlined_call_operand.vmem [shape: f32[1,128], index: 6, kind: input, shape index: {}]
  %s7 = inlined_call_operand.hbm [shape: f32[16,128], index: 7, kind: output, shape index: {}]
  %s8 = sld [smem:[#allocation0]]
  $region58: #{tpu_custom_call.1} parent=0
    _
  %s10 = ssub.s32 1, %s8
  %s11 = scalar_select 0, %s10, %s8
  $region1: #{tpu_custom_call.1} parent=0
    #allocation2 [shape = 'u8[8192]{0}', space=vmem, size = 0x2000, scoped, tag = 'input window, operand 0, single buffered']
    #allocation3 [shape = 's32[1]{0}', space=sflag, size = 0x4, scoped, tag = 'scoped memory for tpu_custom_call.1']
    #allocation4 [shape = 's32[1]{0}', space=sflag, size = 0x4, scoped, tag = 'scoped memory for tpu_custom_call.1']
    #allocation5 [shape = 'u8[32768]{0}', space=vmem, size = 0x8000, scoped, tag = 'input window, operand 1, single buffered']
    #allocation6 [shape = 's32[1]{0}', space=sflag, size = 0x4, scoped, tag = 'scoped memory for tpu_custom_call.1']
    #allocation7 [shape = 'u8[2048]{0}', space=vmem, size = 0x800, scoped, tag = 'input window, operand 2, single buffered']
    #allocation8 [shape = 'u8[131072]{0}', space=vmem, size = 0x20000, scoped, tag = 'input window, operand 3, single buffered']
    #allocation9 [shape = 's32[1]{0}', space=sflag, size = 0x4, scoped, tag = 'scoped memory for tpu_custom_call.1']
    #allocation10 [shape = 'u8[32768]{0}', space=vmem, size = 0x8000, scoped, tag = 'input window, operand 5, single buffered']
    #allocation11 [shape = 'u8[8192]{0}', space=vmem, size = 0x2000, scoped, tag = 'output window, operand 0, single buffered']
    %12 = vsyncpa [#allocation3], 0
    %13 = vsyncpa [#allocation6], 0
    %14 = vsyncpa [#allocation9], 0
    %15 = vsyncpa [#allocation4], 0
    // Predicated region
    $region2: #{tpu_custom_call.1} parent=1 // pred_check
      _
    $region3: #{tpu_custom_call.1} parent=1 // pred_check_branch
      %17 = sbr.rel (0) target = $region5
    $region4: #{tpu_custom_call.1} parent=1 // pred_region
      %19 = vsyncadd [#allocation3], 0
      %s20 = sshll.u32 %s0, 4
      %s21 = int_to_ptr.hbm [resolvable:$true] %s20
      %s22 = sshll.u32 [#allocation2], 4
      %s23 = int_to_ptr.vmem [resolvable:$true] %s22
      %28 = dma.hbm_to_vmem [thread:$0]  %s21, 256, %s23, [#allocation3], 128, 128, 8
    $region5: #{tpu_custom_call.1} parent=1 // pred_fallthru
      _
    // Predicated region
    $region6: #{tpu_custom_call.1} parent=1 // pred_check
      _
    $region7: #{tpu_custom_call.1} parent=1 // pred_check_branch
      %30 = sbr.rel (0) target = $region9
    $region8: #{tpu_custom_call.1} parent=1 // pred_region
      %32 = vsyncadd [#allocation6], 0
      %s33 = sshll.u32 %s1, 4
      %s34 = int_to_ptr.hbm [resolvable:$true] %s33
      %s35 = sshll.u32 [#allocation5], 4
      %s36 = int_to_ptr.vmem [resolvable:$true] %s35
      %41 = dma.hbm_to_vmem [thread:$0]  %s34, 1024, %s36, [#allocation6], 256, 256, 16
    $region9: #{tpu_custom_call.1} parent=1 // pred_fallthru
      _
    // Predicated region
    $region10: #{tpu_custom_call.1} parent=1 // pred_check
      _
    $region11: #{tpu_custom_call.1} parent=1 // pred_check_branch
      %43 = sbr.rel (0) target = $region13
    $region12: #{tpu_custom_call.1} parent=1 // pred_region
      %45 = vsyncadd [#allocation6], 0
      %s47 = sshll.u32 %s2, 4
      %s48 = int_to_ptr.hbm [resolvable:$true] %s47
      %s49 = sshll.u32 [#allocation7], 4
      %s50 = int_to_ptr.vmem [resolvable:$true] %s49
      %52 = dma.hbm_to_vmem [thread:$0]  %s48, 64, %s50, [#allocation6]
    $region13: #{tpu_custom_call.1} parent=1 // pred_fallthru
      _
    // Predicated region
    $region14: #{tpu_custom_call.1} parent=1 // pred_check
      _
    $region15: #{tpu_custom_call.1} parent=1 // pred_check_branch
      %54 = sbr.rel (0) target = $region17
    $region16: #{tpu_custom_call.1} parent=1 // pred_region
      %56 = vsyncadd [#allocation9], 0
      %s57 = sshll.u32 %s3, 4
      %s58 = int_to_ptr.hbm [resolvable:$true] %s57
      %s59 = sshll.u32 [#allocation8], 4
      %s60 = int_to_ptr.vmem [resolvable:$true] %s59
      %65 = dma.hbm_to_vmem [thread:$0]  %s58, 4096, %s60, [#allocation9], 64, 64, 4
    $region17: #{tpu_custom_call.1} parent=1 // pred_fallthru
      _
    // Predicated region
    $region18: #{tpu_custom_call.1} parent=1 // pred_check
      _
    $region19: #{tpu_custom_call.1} parent=1 // pred_check_branch
      %67 = sbr.rel (0) target = $region21
    $region20: #{tpu_custom_call.1} parent=1 // pred_region
      _
    $region21: #{tpu_custom_call.1} parent=1 // pred_fallthru
      _
    // Predicated region
    $region22: #{tpu_custom_call.1} parent=1 // pred_check
      _
    $region23: #{tpu_custom_call.1} parent=1 // pred_check_branch
      %69 = sbr.rel (0) target = $region25
    $region24: #{tpu_custom_call.1} parent=1 // pred_region
      %71 = vsyncadd [#allocation9], 0
      %s72 = sshll.u32 %s5, 4
      %s73 = int_to_ptr.hbm [resolvable:$true] %s72
      %s74 = sshll.u32 [#allocation10], 4
      %s75 = int_to_ptr.vmem [resolvable:$true] %s74
      %80 = dma.hbm_to_vmem [thread:$0]  %s73, 1024, %s75, [#allocation9], 64, 64, 4
    $region25: #{tpu_custom_call.1} parent=1 // pred_fallthru
      _
    // Predicated region
    $region26: #{tpu_custom_call.1} parent=1 // pred_check
      _
    $region27: #{tpu_custom_call.1} parent=1 // pred_check_branch
      %82 = sbr.rel (0) target = $region29
    $region28: #{tpu_custom_call.1} parent=1 // pred_region
      _
    $region29: #{tpu_custom_call.1} parent=1 // pred_fallthru
      _
    // Predicated region
    $region30: #{tpu_custom_call.1} parent=1 // pred_check
      _
    $region31: #{tpu_custom_call.1} parent=1 // pred_check_branch
      %84 = sbr.rel (0) target = $region33
    $region32: #{tpu_custom_call.1} parent=1 // pred_region
      %86 = dma.done [#allocation3], 256
    $region33: #{tpu_custom_call.1} parent=1 // pred_fallthru
      _
    // Predicated region
    $region34: #{tpu_custom_call.1} parent=1 // pred_check
      _
    $region35: #{tpu_custom_call.1} parent=1 // pred_check_branch
      %88 = sbr.rel (0) target = $region37
    $region36: #{tpu_custom_call.1} parent=1 // pred_region
      %90 = dma.done [#allocation6], 1024
    $region37: #{tpu_custom_call.1} parent=1 // pred_fallthru
      _
    // Predicated region
    $region38: #{tpu_custom_call.1} parent=1 // pred_check
      _
    $region39: #{tpu_custom_call.1} parent=1 // pred_check_branch
      %92 = sbr.rel (0) target = $region41
    $region40: #{tpu_custom_call.1} parent=1 // pred_region
      %94 = dma.done [#allocation6], 64
    $region41: #{tpu_custom_call.1} parent=1 // pred_fallthru
      _
    // Predicated region
    $region42: #{tpu_custom_call.1} parent=1 // pred_check
      _
    $region43: #{tpu_custom_call.1} parent=1 // pred_check_branch
      %96 = sbr.rel (0) target = $region45
    $region44: #{tpu_custom_call.1} parent=1 // pred_region
      %98 = dma.done [#allocation9], 4096
    $region45: #{tpu_custom_call.1} parent=1 // pred_fallthru
      _
    // Predicated region
    $region46: #{tpu_custom_call.1} parent=1 // pred_check
      _
    $region47: #{tpu_custom_call.1} parent=1 // pred_check_branch
      %100 = sbr.rel (0) target = $region49
    $region48: #{tpu_custom_call.1} parent=1 // pred_region
      %102 = dma.done [#allocation9], 1024
    $region49: #{tpu_custom_call.1} parent=1 // pred_fallthru
      _
    %v104 = vld [vmem:[#allocation2] sm:$0xff]
    %v105 = vld [vmem:[#allocation2 + $0x8] sm:$0xff]
    %v106 = vpack.c.bf16 %v105, %v104
    %v107 = vld [vmem:[#allocation5] sm:$0xff]
    %v108 = vld [vmem:[#allocation5 + $0x8] sm:$0xff]
    %v109 = vld [vmem:[#allocation5 + $0x10] sm:$0xff]
    %v110 = vld [vmem:[#allocation5 + $0x18] sm:$0xff]
    %v111 = vld [vmem:[#allocation5 + $0x20] sm:$0xff]
    %v112 = vld [vmem:[#allocation5 + $0x28] sm:$0xff]
    %v113 = vld [vmem:[#allocation5 + $0x30] sm:$0xff]
    %v114 = vld [vmem:[#allocation5 + $0x38] sm:$0xff]
    %v115 = vld [vmem:[#allocation7] sm:$0xf]
    %v117 = vperm.slane %v115, 0
    %v118 = vperm.slane %v115, 1
    %v119 = vperm.slane %v115, 2
    %v120 = vperm.slane %v115, 3
    %v133 = vunpack.c.l.b16 %v107
    %v134 = vunpack.c.h.b16 %v107
    %v135 = vunpack.c.l.b16 %v108
    %v136 = vunpack.c.h.b16 %v108
    %v137 = vunpack.c.l.b16 %v109
    %v138 = vunpack.c.h.b16 %v109
    %v139 = vunpack.c.l.b16 %v110
    %v140 = vunpack.c.h.b16 %v110
    %v141 = vunpack.c.l.b16 %v111
    %v142 = vunpack.c.h.b16 %v111
    %v143 = vunpack.c.l.b16 %v112
    %v144 = vunpack.c.h.b16 %v112
    %v145 = vunpack.c.l.b16 %v113
    %v146 = vunpack.c.h.b16 %v113
    %v147 = vunpack.c.l.b16 %v114
    %v148 = vunpack.c.h.b16 %v114
    %v149 = vpack.c.b16 %v137, %v133
    %v150 = vpack.c.b16 %v138, %v134
    %v151 = vpack.c.b16 %v139, %v135
    %v152 = vpack.c.b16 %v140, %v136
    %v153 = vpack.c.b16 %v145, %v141
    %v154 = vpack.c.b16 %v146, %v142
    %v155 = vpack.c.b16 %v147, %v143
    %v156 = vpack.c.b16 %v148, %v144
    %vm165 = vcmask 261120
    %v167 = vsel %vm165, %v106, 0
    %169 = vmatpush.bf16.msra.mxu0 0
    %170 = vmatpush.bf16.msra.mxu0 0
    %171 = vmatpush.bf16.msra.mxu0 0
    %172 = vmatpush.bf16.msra.mxu0 0
    %173 = vmatpush.bf16.msra.mxu0 0
    %174 = vmatpush.bf16.msra.mxu0 0
    %175 = vmatpush.bf16.msra.mxu0 %v153
    %176 = vmatpush.bf16.msra.mxu0 %v149
    %177 = vmatmul.bf16.gmra.mxu0 %v167
    %v178 = vpop.f32.mrf.mxu0
    %v179 = vadd.f32 %v117, %v178
    %v180 = vpop.f32.mrf.mxu0
    %v181 = vadd.f32 %v117, %v180
    %182 = vdwg.mxu0
    %183 = vmatpush.bf16.msra.mxu0 0
    %184 = vmatpush.bf16.msra.mxu0 0
    %185 = vmatpush.bf16.msra.mxu0 0
    %186 = vmatpush.bf16.msra.mxu0 0
    %187 = vmatpush.bf16.msra.mxu0 0
    %188 = vmatpush.bf16.msra.mxu0 0
    %189 = vmatpush.bf16.msra.mxu0 %v154
    %190 = vmatpush.bf16.msra.mxu0 %v150
    %191 = vmatmul.bf16.gmra.mxu0 %v167
    %v192 = vpop.f32.mrf.mxu0
    %v193 = vadd.f32 %v118, %v192
    %v194 = vpop.f32.mrf.mxu0
    %v195 = vadd.f32 %v118, %v194
    %196 = vdwg.mxu0
    %197 = vmatpush.bf16.msra.mxu0 0
    %198 = vmatpush.bf16.msra.mxu0 0
    %199 = vmatpush.bf16.msra.mxu0 0
    %200 = vmatpush.bf16.msra.mxu0 0
    %201 = vmatpush.bf16.msra.mxu0 0
    %202 = vmatpush.bf16.msra.mxu0 0
    %203 = vmatpush.bf16.msra.mxu0 %v155
    %204 = vmatpush.bf16.msra.mxu0 %v151
    %205 = vmatmul.bf16.gmra.mxu0 %v167
    %v206 = vpop.f32.mrf.mxu0
    %v207 = vadd.f32 %v119, %v206
    %v208 = vpop.f32.mrf.mxu0
    %v209 = vadd.f32 %v119, %v208
    %210 = vdwg.mxu0
    %211 = vmatpush.bf16.msra.mxu0 0
    %212 = vmatpush.bf16.msra.mxu0 0
    %213 = vmatpush.bf16.msra.mxu0 0
    %214 = vmatpush.bf16.msra.mxu0 0
    %215 = vmatpush.bf16.msra.mxu0 0
    %216 = vmatpush.bf16.msra.mxu0 0
    %217 = vmatpush.bf16.msra.mxu0 %v156
    %218 = vmatpush.bf16.msra.mxu0 %v152
    %219 = vmatmul.bf16.gmra.mxu0 %v167
    %v220 = vpop.f32.mrf.mxu0
    %v221 = vadd.f32 %v120, %v220
    %v222 = vpop.f32.mrf.mxu0
    %v223 = vadd.f32 %v120, %v222
    %224 = vdwg.mxu0
    %v225 = vmax.f32 %v179, 0.0
    %v226 = vmax.f32 %v193, 0.0
    %v227 = vmax.f32 %v207, 0.0
    %v228 = vmax.f32 %v221, 0.0
    %v229 = vmax.f32 %v181, 0.0
    %v230 = vmax.f32 %v195, 0.0
    %v231 = vmax.f32 %v209, 0.0
    %v232 = vmax.f32 %v223, 0.0
    %v233 = vpack.c.bf16 %v229, %v225
    %v234 = vpack.c.bf16 %v230, %v226
    %v235 = vpack.c.bf16 %v231, %v227
    %v236 = vpack.c.bf16 %v232, %v228
    %v237 = vld [vmem:[#allocation8] sm:$0xf]
    %v238 = vld [vmem:[#allocation8 + $0x4] sm:$0xf]
    %v239 = vld [vmem:[#allocation8 + $0x8] sm:$0xf]
    %v240 = vld [vmem:[#allocation8 + $0xc] sm:$0xf]
    %v241 = vld [vmem:[#allocation8 + $0x10] sm:$0xf]
    %v242 = vld [vmem:[#allocation8 + $0x14] sm:$0xf]
    %v243 = vld [vmem:[#allocation8 + $0x18] sm:$0xf]
    %v244 = vld [vmem:[#allocation8 + $0x1c] sm:$0xf]
    %v245 = vld [vmem:[#allocation8 + $0x20] sm:$0xf]
    %v246 = vld [vmem:[#allocation8 + $0x24] sm:$0xf]
    %v247 = vld [vmem:[#allocation8 + $0x28] sm:$0xf]
    %v248 = vld [vmem:[#allocation8 + $0x2c] sm:$0xf]
    %v249 = vld [vmem:[#allocation8 + $0x30] sm:$0xf]
    %v250 = vld [vmem:[#allocation8 + $0x34] sm:$0xf]
    %v251 = vld [vmem:[#allocation8 + $0x38] sm:$0xf]
    %v252 = vld [vmem:[#allocation8 + $0x3c] sm:$0xf]
    %v253 = vld [vmem:[#allocation8 + $0x40] sm:$0xf]
    %v254 = vld [vmem:[#allocation8 + $0x44] sm:$0xf]
    %v255 = vld [vmem:[#allocation8 + $0x48] sm:$0xf]
    %v256 = vld [vmem:[#allocation8 + $0x4c] sm:$0xf]
    %v257 = vld [vmem:[#allocation8 + $0x50] sm:$0xf]
    %v258 = vld [vmem:[#allocation8 + $0x54] sm:$0xf]
    %v259 = vld [vmem:[#allocation8 + $0x58] sm:$0xf]
    %v260 = vld [vmem:[#allocation8 + $0x5c] sm:$0xf]
    %v261 = vld [vmem:[#allocation8 + $0x60] sm:$0xf]
    %v262 = vld [vmem:[#allocation8 + $0x64] sm:$0xf]
    %v263 = vld [vmem:[#allocation8 + $0x68] sm:$0xf]
    %v264 = vld [vmem:[#allocation8 + $0x6c] sm:$0xf]
    %v265 = vld [vmem:[#allocation8 + $0x70] sm:$0xf]
    %v266 = vld [vmem:[#allocation8 + $0x74] sm:$0xf]
    %v267 = vld [vmem:[#allocation8 + $0x78] sm:$0xf]
    %v268 = vld [vmem:[#allocation8 + $0x7c] sm:$0xf]
    %v269 = vld [vmem:[#allocation8 + $0x80] sm:$0xf]
    %v270 = vld [vmem:[#allocation8 + $0x84] sm:$0xf]
    %v271 = vld [vmem:[#allocation8 + $0x88] sm:$0xf]
    %v272 = vld [vmem:[#allocation8 + $0x8c] sm:$0xf]
    %v273 = vld [vmem:[#allocation8 + $0x90] sm:$0xf]
    %v274 = vld [vmem:[#allocation8 + $0x94] sm:$0xf]
    %v275 = vld [vmem:[#allocation8 + $0x98] sm:$0xf]
    %v276 = vld [vmem:[#allocation8 + $0x9c] sm:$0xf]
    %v277 = vld [vmem:[#allocation8 + $0xa0] sm:$0xf]
    %v278 = vld [vmem:[#allocation8 + $0xa4] sm:$0xf]
    %v279 = vld [vmem:[#allocation8 + $0xa8] sm:$0xf]
    %v280 = vld [vmem:[#allocation8 + $0xac] sm:$0xf]
    %v281 = vld [vmem:[#allocation8 + $0xb0] sm:$0xf]
    %v282 = vld [vmem:[#allocation8 + $0xb4] sm:$0xf]
    %v283 = vld [vmem:[#allocation8 + $0xb8] sm:$0xf]
    %v284 = vld [vmem:[#allocation8 + $0xbc] sm:$0xf]
    %v285 = vld [vmem:[#allocation8 + $0xc0] sm:$0xf]
    %v286 = vld [vmem:[#allocation8 + $0xc4] sm:$0xf]
    %v287 = vld [vmem:[#allocation8 + $0xc8] sm:$0xf]
    %v288 = vld [vmem:[#allocation8 + $0xcc] sm:$0xf]
    %v289 = vld [vmem:[#allocation8 + $0xd0] sm:$0xf]
    %v290 = vld [vmem:[#allocation8 + $0xd4] sm:$0xf]
    %v291 = vld [vmem:[#allocation8 + $0xd8] sm:$0xf]
    %v292 = vld [vmem:[#allocation8 + $0xdc] sm:$0xf]
    %v293 = vld [vmem:[#allocation8 + $0xe0] sm:$0xf]
    %v294 = vld [vmem:[#allocation8 + $0xe4] sm:$0xf]
    %v295 = vld [vmem:[#allocation8 + $0xe8] sm:$0xf]
    %v296 = vld [vmem:[#allocation8 + $0xec] sm:$0xf]
    %v297 = vld [vmem:[#allocation8 + $0xf0] sm:$0xf]
    %v298 = vld [vmem:[#allocation8 + $0xf4] sm:$0xf]
    %v299 = vld [vmem:[#allocation8 + $0xf8] sm:$0xf]
    %v300 = vld [vmem:[#allocation8 + $0xfc] sm:$0xf]
    %v301 = vld [vmem:[%s4] sm:$0x1]
    %v303 = vperm.slane %v301, 0
    %v369 = vunpack.c.l.b16 %v237
    %v370 = vunpack.c.l.b16 %v238
    %v371 = vunpack.c.l.b16 %v239
    %v372 = vunpack.c.l.b16 %v240
    %v373 = vunpack.c.l.b16 %v241
    %v374 = vunpack.c.l.b16 %v242
    %v375 = vunpack.c.l.b16 %v243
    %v376 = vunpack.c.l.b16 %v244
    %v377 = vunpack.c.l.b16 %v245
    %v378 = vunpack.c.l.b16 %v246
    %v379 = vunpack.c.l.b16 %v247
    %v380 = vunpack.c.l.b16 %v248
    %v381 = vunpack.c.l.b16 %v249
    %v382 = vunpack.c.l.b16 %v250
    %v383 = vunpack.c.l.b16 %v251
    %v384 = vunpack.c.l.b16 %v252
    %v385 = vunpack.c.l.b16 %v253
    %v386 = vunpack.c.l.b16 %v254
    %v387 = vunpack.c.l.b16 %v255
    %v388 = vunpack.c.l.b16 %v256
    %v389 = vunpack.c.l.b16 %v257
    %v390 = vunpack.c.l.b16 %v258
    %v391 = vunpack.c.l.b16 %v259
    %v392 = vunpack.c.l.b16 %v260
    %v393 = vunpack.c.l.b16 %v261
    %v394 = vunpack.c.l.b16 %v262
    %v395 = vunpack.c.l.b16 %v263
    %v396 = vunpack.c.l.b16 %v264
    %v397 = vunpack.c.l.b16 %v265
    %v398 = vunpack.c.l.b16 %v266
    %v399 = vunpack.c.l.b16 %v267
    %v400 = vunpack.c.l.b16 %v268
    %v401 = vunpack.c.l.b16 %v269
    %v402 = vunpack.c.l.b16 %v270
    %v403 = vunpack.c.l.b16 %v271
    %v404 = vunpack.c.l.b16 %v272
    %v405 = vunpack.c.l.b16 %v273
    %v406 = vunpack.c.l.b16 %v274
    %v407 = vunpack.c.l.b16 %v275
    %v408 = vunpack.c.l.b16 %v276
    %v409 = vunpack.c.l.b16 %v277
    %v410 = vunpack.c.l.b16 %v278
    %v411 = vunpack.c.l.b16 %v279
    %v412 = vunpack.c.l.b16 %v280
    %v413 = vunpack.c.l.b16 %v281
    %v414 = vunpack.c.l.b16 %v282
    %v415 = vunpack.c.l.b16 %v283
    %v416 = vunpack.c.l.b16 %v284
    %v417 = vunpack.c.l.b16 %v285
    %v418 = vunpack.c.l.b16 %v286
    %v419 = vunpack.c.l.b16 %v287
    %v420 = vunpack.c.l.b16 %v288
    %v421 = vunpack.c.l.b16 %v289
    %v422 = vunpack.c.l.b16 %v290
    %v423 = vunpack.c.l.b16 %v291
    %v424 = vunpack.c.l.b16 %v292
    %v425 = vunpack.c.l.b16 %v293
    %v426 = vunpack.c.l.b16 %v294
    %v427 = vunpack.c.l.b16 %v295
    %v428 = vunpack.c.l.b16 %v296
    %v429 = vunpack.c.l.b16 %v297
    %v430 = vunpack.c.l.b16 %v298
    %v431 = vunpack.c.l.b16 %v299
    %v432 = vunpack.c.l.b16 %v300
    %v433 = vpack.c.b16 %v370, %v369
    %v434 = vpack.c.b16 %v372, %v371
    %v435 = vpack.c.b16 %v374, %v373
    %v436 = vpack.c.b16 %v376, %v375
    %v437 = vpack.c.b16 %v378, %v377
    %v438 = vpack.c.b16 %v380, %v379
    %v439 = vpack.c.b16 %v382, %v381
    %v440 = vpack.c.b16 %v384, %v383
    %v441 = vpack.c.b16 %v386, %v385
    %v442 = vpack.c.b16 %v388, %v387
    %v443 = vpack.c.b16 %v390, %v389
    %v444 = vpack.c.b16 %v392, %v391
    %v445 = vpack.c.b16 %v394, %v393
    %v446 = vpack.c.b16 %v396, %v395
    %v447 = vpack.c.b16 %v398, %v397
    %v448 = vpack.c.b16 %v400, %v399
    %v449 = vpack.c.b16 %v402, %v401
    %v450 = vpack.c.b16 %v404, %v403
    %v451 = vpack.c.b16 %v406, %v405
    %v452 = vpack.c.b16 %v408, %v407
    %v453 = vpack.c.b16 %v410, %v409
    %v454 = vpack.c.b16 %v412, %v411
    %v455 = vpack.c.b16 %v414, %v413
    %v456 = vpack.c.b16 %v416, %v415
    %v457 = vpack.c.b16 %v418, %v417
    %v458 = vpack.c.b16 %v420, %v419
    %v459 = vpack.c.b16 %v422, %v421
    %v460 = vpack.c.b16 %v424, %v423
    %v461 = vpack.c.b16 %v426, %v425
    %v462 = vpack.c.b16 %v428, %v427
    %v463 = vpack.c.b16 %v430, %v429
    %v464 = vpack.c.b16 %v432, %v431
    %497 = vmatpush.bf16.msra.mxu0 %v440
    %498 = vmatpush.bf16.msra.mxu0 %v439
    %499 = vmatpush.bf16.msra.mxu0 %v438
    %500 = vmatpush.bf16.msra.mxu0 %v437
    %501 = vmatpush.bf16.msra.mxu0 %v436
    %502 = vmatpush.bf16.msra.mxu0 %v435
    %503 = vmatpush.bf16.msra.mxu0 %v434
    %504 = vmatpush.bf16.msra.mxu0 %v433
    %505 = vmatmul.bf16.gmra.mxu0 %v233
    %v506 = vpop.f32.mrf.mxu0
    %v507 = vadd.f32 %v303, %v506
    %v508 = vpop.f32.mrf.mxu0
    %v509 = vadd.f32 %v303, %v508
    %510 = vdwg.mxu0
    %511 = vmatpush.bf16.msra.mxu0 %v448
    %512 = vmatpush.bf16.msra.mxu0 %v447
    %513 = vmatpush.bf16.msra.mxu0 %v446
    %514 = vmatpush.bf16.msra.mxu0 %v445
    %515 = vmatpush.bf16.msra.mxu0 %v444
    %516 = vmatpush.bf16.msra.mxu0 %v443
    %517 = vmatpush.bf16.msra.mxu0 %v442
    %518 = vmatpush.bf16.msra.mxu0 %v441
    %519 = vmatmul.bf16.gmra.mxu0 %v234
    %v520 = vpop.f32.mrf.mxu0
    %v521 = vadd.f32 %v507, %v520
    %v522 = vpop.f32.mrf.mxu0
    %v523 = vadd.f32 %v509, %v522
    %524 = vdwg.mxu0
    %525 = vmatpush.bf16.msra.mxu0 %v456
    %526 = vmatpush.bf16.msra.mxu0 %v455
    %527 = vmatpush.bf16.msra.mxu0 %v454
    %528 = vmatpush.bf16.msra.mxu0 %v453
    %529 = vmatpush.bf16.msra.mxu0 %v452
    %530 = vmatpush.bf16.msra.mxu0 %v451
    %531 = vmatpush.bf16.msra.mxu0 %v450
    %532 = vmatpush.bf16.msra.mxu0 %v449
    %533 = vmatmul.bf16.gmra.mxu0 %v235
    %v534 = vpop.f32.mrf.mxu0
    %v535 = vadd.f32 %v521, %v534
    %v536 = vpop.f32.mrf.mxu0
    %v537 = vadd.f32 %v523, %v536
    %538 = vdwg.mxu0
    %539 = vmatpush.bf16.msra.mxu0 %v464
    %540 = vmatpush.bf16.msra.mxu0 %v463
    %541 = vmatpush.bf16.msra.mxu0 %v462
    %542 = vmatpush.bf16.msra.mxu0 %v461
    %543 = vmatpush.bf16.msra.mxu0 %v460
    %544 = vmatpush.bf16.msra.mxu0 %v459
    %545 = vmatpush.bf16.msra.mxu0 %v458
    %546 = vmatpush.bf16.msra.mxu0 %v457
    %547 = vmatmul.bf16.gmra.mxu0 %v236
    %v548 = vpop.f32.mrf.mxu0
    %v549 = vadd.f32 %v535, %v548
    %v550 = vpop.f32.mrf.mxu0
    %v551 = vadd.f32 %v537, %v550
    %552 = vdwg.mxu0
    %v553 = vmax.f32 %v549, 0.0
    %v554 = vmax.f32 %v551, 0.0
    %v555 = vpack.c.bf16 %v554, %v553
    %v556 = vld [vmem:[#allocation10] sm:$0xf]
    %v557 = vld [vmem:[#allocation10 + $0x4] sm:$0xf]
    %v558 = vld [vmem:[#allocation10 + $0x8] sm:$0xf]
    %v559 = vld [vmem:[#allocation10 + $0xc] sm:$0xf]
    %v560 = vld [vmem:[#allocation10 + $0x10] sm:$0xf]
    %v561 = vld [vmem:[#allocation10 + $0x14] sm:$0xf]
    %v562 = vld [vmem:[#allocation10 + $0x18] sm:$0xf]
    %v563 = vld [vmem:[#allocation10 + $0x1c] sm:$0xf]
    %v564 = vld [vmem:[#allocation10 + $0x20] sm:$0xf]
    %v565 = vld [vmem:[#allocation10 + $0x24] sm:$0xf]
    %v566 = vld [vmem:[#allocation10 + $0x28] sm:$0xf]
    %v567 = vld [vmem:[#allocation10 + $0x2c] sm:$0xf]
    %v568 = vld [vmem:[#allocation10 + $0x30] sm:$0xf]
    %v569 = vld [vmem:[#allocation10 + $0x34] sm:$0xf]
    %v570 = vld [vmem:[#allocation10 + $0x38] sm:$0xf]
    %v571 = vld [vmem:[#allocation10 + $0x3c] sm:$0xf]
    %v572 = vld [vmem:[%s6] sm:$0x1]
    %v574 = vperm.slane %v572, 0
    %v592 = vunpack.c.l.b16 %v556
    %v593 = vunpack.c.l.b16 %v557
    %v594 = vunpack.c.l.b16 %v558
    %v595 = vunpack.c.l.b16 %v559
    %v596 = vunpack.c.l.b16 %v560
    %v597 = vunpack.c.l.b16 %v561
    %v598 = vunpack.c.l.b16 %v562
    %v599 = vunpack.c.l.b16 %v563
    %v600 = vunpack.c.l.b16 %v564
    %v601 = vunpack.c.l.b16 %v565
    %v602 = vunpack.c.l.b16 %v566
    %v603 = vunpack.c.l.b16 %v567
    %v604 = vunpack.c.l.b16 %v568
    %v605 = vunpack.c.l.b16 %v569
    %v606 = vunpack.c.l.b16 %v570
    %v607 = vunpack.c.l.b16 %v571
    %v608 = vpack.c.b16 %v593, %v592
    %v609 = vpack.c.b16 %v595, %v594
    %v610 = vpack.c.b16 %v597, %v596
    %v611 = vpack.c.b16 %v599, %v598
    %v612 = vpack.c.b16 %v601, %v600
    %v613 = vpack.c.b16 %v603, %v602
    %v614 = vpack.c.b16 %v605, %v604
    %v615 = vpack.c.b16 %v607, %v606
    %624 = vmatpush.bf16.msra.mxu0 %v615
    %625 = vmatpush.bf16.msra.mxu0 %v614
    %626 = vmatpush.bf16.msra.mxu0 %v613
    %627 = vmatpush.bf16.msra.mxu0 %v612
    %628 = vmatpush.bf16.msra.mxu0 %v611
    %629 = vmatpush.bf16.msra.mxu0 %v610
    %630 = vmatpush.bf16.msra.mxu0 %v609
    %631 = vmatpush.bf16.msra.mxu0 %v608
    %632 = vmatmul.bf16.gmra.mxu0 %v555
    %v633 = vpop.f32.mrf.mxu0
    %v634 = vadd.f32 %v574, %v633
    %v635 = vpop.f32.mrf.mxu0
    %v636 = vadd.f32 %v574, %v635
    %637 = vdwg.mxu0
    %638 = vst [vmem:[#allocation11] sm:$0xff] %v634
    %639 = vst [vmem:[#allocation11 + $0x8] sm:$0xff] %v636
    // Predicated region
    $region50: #{tpu_custom_call.1} parent=1 // pred_check
      _
    $region51: #{tpu_custom_call.1} parent=1 // pred_check_branch
      %641 = sbr.rel (0) target = $region53
    $region52: #{tpu_custom_call.1} parent=1 // pred_region
      %643 = vsyncadd [#allocation4], 0
      %s644 = sshll.u32 [#allocation11], 4
      %s645 = int_to_ptr.vmem [resolvable:$true] %s644
      %s646 = sshll.u32 %s7, 4
      %s647 = int_to_ptr.hbm [resolvable:$true] %s646
      %652 = dma.vmem_to_hbm [thread:$0]  %s645, 256, %s647, [#allocation4], 128, 128, 8
    $region53: #{tpu_custom_call.1} parent=1 // pred_fallthru
      _
    // Predicated region
    $region54: #{tpu_custom_call.1} parent=1 // pred_check
      _
    $region55: #{tpu_custom_call.1} parent=1 // pred_check_branch
      %654 = sbr.rel (0) target = $region57
    $region56: #{tpu_custom_call.1} parent=1 // pred_region
      %656 = dma.done [#allocation4], 256
    $region57: #{tpu_custom_call.1} parent=1 // pred_fallthru
      _
    %657 = vsyncpa [#allocation3], 1
    %658 = vsyncpa [#allocation6], 1
    %659 = vsyncpa [#allocation9], 1
    %660 = vsyncpa [#allocation4], 1

</llo_original>
